<compile_context>
chip_gen: v7x
topology: tpu7x:2x2x1
jax: 0.10.0
libtpu: 0.0.40
codegen_flags: <defaults>
</compile_context>

<pallas_src>
import functools

import jax
import jax.numpy as jnp
from jax.experimental import pallas as pl
from jax.experimental.pallas import tpu as pltpu


def _gcn_hidden_first_kernel(text_ref, adj_ref, w_ref, b_ref, out_ref, hidden_ref,
                             *, bt, mm_dtype):
    """adj @ (text @ W): hidden cached in VMEM scratch, reused across row tiles.

    text_ref   : (bt, N, F_in)   same block for every row tile -> stays resident
    adj_ref    : (bt, TM, N)     row slab of the adjacency
    w_ref      : (F_in, F_pad)
    b_ref      : (1, F_pad)
    out_ref    : (bt, TM, F_pad)
    hidden_ref : (bt, N, F_pad)  VMEM scratch, written once per batch pack
    """
    row_tile = pl.program_id(1)

    @pl.when(row_tile == 0)
    def _():
        w = w_ref[...]
        for b in range(bt):  # bt is small & static -> unrolled 2-D MXU matmuls
            txt = text_ref[b].astype(jnp.float32)
            hidden_ref[b] = jnp.dot(txt, w, preferred_element_type=jnp.float32)

    bias = b_ref[...]  # (1, F_pad), hoisted out of the loop
    for b in range(bt):
        adj = adj_ref[b]  # (TM, N)
        # degree + 1, exact f32; reciprocal (EUP) + multiply instead of vector divide.
        denom = (jnp.sum(adj, axis=1, keepdims=True) + 1.0).astype(jnp.float32)
        inv = pl.reciprocal(denom, approx=False)

        hid = hidden_ref[b]
        if mm_dtype != jnp.dtype(jnp.float32):
            adj = adj.astype(mm_dtype)
            hid = hid.astype(mm_dtype)
        agg = jnp.dot(adj, hid, preferred_element_type=jnp.float32)  # (TM, F_pad)
        out_ref[b] = (agg * inv + bias).astype(out_ref.dtype)


def _gcn_aggregate_first_kernel(text_ref, adj_ref, w_ref, b_ref, out_ref,
                                *, bt, mm_dtype):
    """(adj @ text) @ W: fewer MXU flops when F_in < F_pad, no scratch needed."""
    w = w_ref[...]       # (F_in, F_pad)
    bias = b_ref[...]    # (1, F_pad)
    for b in range(bt):
        adj = adj_ref[b]  # (TM, N)
        denom = (jnp.sum(adj, axis=1, keepdims=True) + 1.0).astype(jnp.float32)
        inv = pl.reciprocal(denom, approx=False)

        txt = text_ref[b].astype(jnp.float32)  # (N, F_in)
        if mm_dtype != jnp.dtype(jnp.float32):
            adj = adj.astype(mm_dtype)
            txt = txt.astype(mm_dtype)
        agg = jnp.dot(adj, txt, preferred_element_type=jnp.float32)   # (TM, F_in)
        out = jnp.dot(agg, w, preferred_element_type=jnp.float32)     # (TM, F_pad)
        out_ref[b] = (out * inv + bias).astype(out_ref.dtype)


def _pick_row_tile(n, max_tile=256):
    """Largest multiple-of-8 divisor of n that is <= max_tile (or n itself)."""
    if n <= max_tile:
        return n
    for tm in range(max_tile, 0, -8):
        if n % tm == 0:
            return tm
    return n  # no friendly divisor: fall back to a single full-row block


def _pick_batch_pack(batch, n, f_in, f_pad, tm, with_hidden_scratch,
                     budget_bytes=6 * 1024 * 1024):
    """How many batch elements to pack per grid step (amortize per-step overhead)."""
    per_batch = 4 * (tm * n + n * f_in + tm * f_pad)  # adj slab + text + out (f32)
    if with_hidden_scratch:
        per_batch += 4 * n * f_pad                    # resident hidden scratch
    bt = max(1, min(8, budget_bytes // max(per_batch, 1), batch))
    while batch % bt:
        bt -= 1
    return bt


def graph_convolution(text, adj, weight, bias=None, *,
                      matmul_dtype=jnp.float32, row_tile=None, batch_pack=None,
                      aggregate_first=None):
    """text: (B, N, F_in), adj: (B, N, N), weight: (F_in, F_out), bias: (F_out,)."""
    B, N, F_in = text.shape
    assert adj.shape == (B, N, N)
    F_out = weight.shape[1]

    # Lane-dense output: pad F_out to a multiple of 128 so stores are full-lane vst.
    F_pad = pl.cdiv(F_out, 128) * 128
    weight = weight.astype(jnp.float32)
    if F_pad != F_out:
        weight = jnp.pad(weight, ((0, 0), (0, F_pad - F_out)))
    if bias is None:
        bias2d = jnp.zeros((1, F_pad), jnp.float32)
    else:
        bias2d = jnp.pad(bias.astype(jnp.float32), (0, F_pad - F_out)).reshape(1, F_pad)

    if aggregate_first is None:
        # (adj @ text) @ W costs 2*N^2*F_in on the N^2 term vs 2*N^2*F_pad.
        aggregate_first = F_in < F_pad

    tm = row_tile if row_tile is not None else _pick_row_tile(N)
    bt = batch_pack if batch_pack is not None else _pick_batch_pack(
        B, N, F_in, F_pad, tm, with_hidden_scratch=not aggregate_first)
    mm_dtype = jnp.dtype(matmul_dtype)

    in_specs = [
        # text: full pack, same block across row tiles -> no re-DMA.
        pl.BlockSpec((bt, N, F_in), lambda b, i: (b, 0, 0)),
        # adj: only a (bt, TM, N) row slab per step.
        pl.BlockSpec((bt, tm, N), lambda b, i: (b, i, 0)),
        pl.BlockSpec((F_in, F_pad), lambda b, i: (0, 0)),   # weight (shared)
        pl.BlockSpec((1, F_pad), lambda b, i: (0, 0)),      # bias (shared)
    ]
    out_spec = pl.BlockSpec((bt, tm, F_pad), lambda b, i: (b, i, 0))

    if aggregate_first:
        kernel = functools.partial(_gcn_aggregate_first_kernel, bt=bt, mm_dtype=mm_dtype)
        scratch = []
        semantics = ("parallel", "parallel")       # no cross-tile state -> fully parallel
    else:
        kernel = functools.partial(_gcn_hidden_first_kernel, bt=bt, mm_dtype=mm_dtype)
        scratch = [pltpu.VMEM((bt, N, F_pad), jnp.float32)]  # cached hidden
        semantics = ("parallel", "arbitrary")      # hidden scratch reused across row tiles

    out = pl.pallas_call(
        kernel,
        out_shape=jax.ShapeDtypeStruct((B, N, F_pad), jnp.float32),
        grid_spec=pltpu.PrefetchScalarGridSpec(
            num_scalar_prefetch=0,
            grid=(B // bt, N // tm),
            in_specs=in_specs,
            out_specs=out_spec,
            scratch_shapes=scratch,
        ),
        compiler_params=pltpu.CompilerParams(
            dimension_semantics=semantics,
            vmem_limit_bytes=48 * 1024 * 1024,
        ),
    )(text, adj, weight, bias2d)

    if F_pad != F_out:
        out = out[..., :F_out]
    return out


if __name__ == "__main__":
    # Small deterministic example: batch=2, nodes=16, in_features=32, out_features=32
    B, N, F_in, F_out = 2, 16, 32, 32

    key = jax.random.PRNGKey(0)
    k_text, k_adj, k_w, k_b = jax.random.split(key, 4)

    text = jax.random.normal(k_text, (B, N, F_in), dtype=jnp.float32)
    adj = jax.nn.relu(jax.random.normal(k_adj, (B, N, N), dtype=jnp.float32))

    stdv = 1.0 / (F_out ** 0.5)
    weight = jax.random.uniform(k_w, (F_in, F_out), minval=-stdv, maxval=stdv,
                                dtype=jnp.float32)
    bias = jax.random.uniform(k_b, (F_out,), minval=-stdv, maxval=stdv,
                              dtype=jnp.float32)

    # Reference in plain JAX (same math/order as the PyTorch forward).
    hidden_ref = jnp.matmul(text.astype(jnp.float32), weight)
    denom_ref = jnp.sum(adj, axis=2, keepdims=True) + 1.0
    out_ref = jnp.matmul(adj, hidden_ref) / denom_ref + bias

    # Auto ordering (aggregate-first here, since F_in < padded F_out).
    out = jax.block_until_ready(graph_convolution(text, adj, weight, bias))
    assert out.shape == out_ref.shape
    assert jnp.allclose(out, out_ref, atol=1e-5, rtol=1e-5), "mismatch (aggregate-first)"

    # Hidden-first path (matches the module's op order exactly) — exercise it too.
    out2 = jax.block_until_ready(
        graph_convolution(text, adj, weight, bias, aggregate_first=False))
    assert jnp.allclose(out2, out_ref, atol=1e-5, rtol=1e-5), "mismatch (hidden-first)"

    print("KERNEL_OK")
</pallas_src>

<mosaic_0001>
module attributes {stable_mosaic.version = 11 : i64} {
  func.func @_gcn_aggregate_first_kernel(%arg0: i32, %arg1: i32, %arg2: memref<2x16x32xf32, #tpu.memory_space<vmem>>, %arg3: memref<2x16x16xf32, #tpu.memory_space<vmem>>, %arg4: memref<32x128xf32, #tpu.memory_space<vmem>>, %arg5: memref<1x128xf32, #tpu.memory_space<vmem>>, %arg6: memref<2x16x128xf32, #tpu.memory_space<vmem>>) attributes {dimension_semantics = [#tpu.dimension_semantics<parallel>, #tpu.dimension_semantics<parallel>], iteration_bounds = array<i64: 1, 1>, scalar_prefetch = 0 : i64, scratch_operands = 0 : i64, tpu.core_type = #tpu.core_type<tc>, window_params = [{transform_indices = @transform_0, window_bounds = array<i64: 2, 16, 32>}, {transform_indices = @transform_1, window_bounds = array<i64: 2, 16, 16>}, {pipeline_mode = #tpu.pipeline_mode<synchronous>, transform_indices = @transform_2, window_bounds = array<i64: 32, 128>}, {pipeline_mode = #tpu.pipeline_mode<synchronous>, transform_indices = @transform_3, window_bounds = array<i64: 1, 128>}, {transform_indices = @transform_4, window_bounds = array<i64: 2, 16, 128>}]} {
    %c0 = arith.constant 0 : index
    %c0_0 = arith.constant 0 : index
    %0 = vector.load %arg4[%c0, %c0_0] : memref<32x128xf32, #tpu.memory_space<vmem>>, vector<32x128xf32>
    %c0_1 = arith.constant 0 : index
    %c0_2 = arith.constant 0 : index
    %1 = vector.load %arg5[%c0_1, %c0_2] : memref<1x128xf32, #tpu.memory_space<vmem>>, vector<1x128xf32>
    %c0_3 = arith.constant 0 : index
    %c0_4 = arith.constant 0 : index
    %c0_5 = arith.constant 0 : index
    %2 = vector.load %arg3[%c0_3, %c0_4, %c0_5] : memref<2x16x16xf32, #tpu.memory_space<vmem>>, vector<1x16x16xf32>
    %3 = vector.shape_cast %2 : vector<1x16x16xf32> to vector<16x16xf32>
    %cst = arith.constant dense<0.000000e+00> : vector<16xf32>
    %4 = vector.multi_reduction <add>, %3, %cst [1] : vector<16x16xf32> to vector<16xf32>
    %5 = vector.shape_cast %4 : vector<16xf32> to vector<16x1xf32>
    %cst_6 = arith.constant 1.000000e+00 : f32
    %6 = vector.broadcast %cst_6 : f32 to vector<16x1xf32>
    %7 = arith.addf %5, %6 : vector<16x1xf32>
    %8 = tpu.reciprocal %7 : vector<16x1xf32> -> vector<16x1xf32>
    %c0_7 = arith.constant 0 : index
    %c0_8 = arith.constant 0 : index
    %c0_9 = arith.constant 0 : index
    %9 = vector.load %arg2[%c0_7, %c0_8, %c0_9] : memref<2x16x32xf32, #tpu.memory_space<vmem>>, vector<1x16x32xf32>
    %10 = vector.shape_cast %9 : vector<1x16x32xf32> to vector<16x32xf32>
    %cst_10 = arith.constant dense<0.000000e+00> : vector<16x32xf32>
    %11 = tpu.matmul %3, %10, %cst_10 {dimension_numbers = #tpu.dot_dimension_numbers<[1], [0], [0], [1], [0, 0, 1, 1], [], []>} : vector<16x16xf32>, vector<16x32xf32>, vector<16x32xf32> -> vector<16x32xf32>
    %cst_11 = arith.constant dense<0.000000e+00> : vector<16x128xf32>
    %12 = tpu.matmul %11, %0, %cst_11 {dimension_numbers = #tpu.dot_dimension_numbers<[1], [0], [0], [1], [0, 0, 1, 1], [], []>} : vector<16x32xf32>, vector<32x128xf32>, vector<16x128xf32> -> vector<16x128xf32>
    %13 = vector.broadcast %8 : vector<16x1xf32> to vector<16x128xf32>
    %14 = arith.mulf %12, %13 : vector<16x128xf32>
    %15 = vector.broadcast %1 : vector<1x128xf32> to vector<16x128xf32>
    %16 = arith.addf %14, %15 : vector<16x128xf32>
    %c0_12 = arith.constant 0 : index
    %c0_13 = arith.constant 0 : index
    %c0_14 = arith.constant 0 : index
    %17 = vector.load %arg6[%c0_12, %c0_13, %c0_14] : memref<2x16x128xf32, #tpu.memory_space<vmem>>, vector<1x16x128xf32>
    %18 = vector.shape_cast %17 : vector<1x16x128xf32> to vector<16x128xf32>
    %19 = vector.shape_cast %16 : vector<16x128xf32> to vector<1x16x128xf32>
    tpu.vector_store %arg6[%c0_12, %c0_13, %c0_14], %19 {strides = array<i32>} : memref<2x16x128xf32, #tpu.memory_space<vmem>>, vector<1x16x128xf32>,
    %c1 = arith.constant 1 : index
    %c0_15 = arith.constant 0 : index
    %c0_16 = arith.constant 0 : index
    %20 = vector.load %arg3[%c1, %c0_15, %c0_16] : memref<2x16x16xf32, #tpu.memory_space<vmem>>, vector<1x16x16xf32>
    %21 = vector.shape_cast %20 : vector<1x16x16xf32> to vector<16x16xf32>
    %cst_17 = arith.constant dense<0.000000e+00> : vector<16xf32>
    %22 = vector.multi_reduction <add>, %21, %cst_17 [1] : vector<16x16xf32> to vector<16xf32>
    %23 = vector.shape_cast %22 : vector<16xf32> to vector<16x1xf32>
    %cst_18 = arith.constant 1.000000e+00 : f32
    %24 = vector.broadcast %cst_18 : f32 to vector<16x1xf32>
    %25 = arith.addf %23, %24 : vector<16x1xf32>
    %26 = tpu.reciprocal %25 : vector<16x1xf32> -> vector<16x1xf32>
    %c1_19 = arith.constant 1 : index
    %c0_20 = arith.constant 0 : index
    %c0_21 = arith.constant 0 : index
    %27 = vector.load %arg2[%c1_19, %c0_20, %c0_21] : memref<2x16x32xf32, #tpu.memory_space<vmem>>, vector<1x16x32xf32>
    %28 = vector.shape_cast %27 : vector<1x16x32xf32> to vector<16x32xf32>
    %cst_22 = arith.constant dense<0.000000e+00> : vector<16x32xf32>
    %29 = tpu.matmul %21, %28, %cst_22 {dimension_numbers = #tpu.dot_dimension_numbers<[1], [0], [0], [1], [0, 0, 1, 1], [], []>} : vector<16x16xf32>, vector<16x32xf32>, vector<16x32xf32> -> vector<16x32xf32>
    %cst_23 = arith.constant dense<0.000000e+00> : vector<16x128xf32>
    %30 = tpu.matmul %29, %0, %cst_23 {dimension_numbers = #tpu.dot_dimension_numbers<[1], [0], [0], [1], [0, 0, 1, 1], [], []>} : vector<16x32xf32>, vector<32x128xf32>, vector<16x128xf32> -> vector<16x128xf32>
    %31 = vector.broadcast %26 : vector<16x1xf32> to vector<16x128xf32>
    %32 = arith.mulf %30, %31 : vector<16x128xf32>
    %33 = vector.broadcast %1 : vector<1x128xf32> to vector<16x128xf32>
    %34 = arith.addf %32, %33 : vector<16x128xf32>
    %c1_24 = arith.constant 1 : index
    %c0_25 = arith.constant 0 : index
    %c0_26 = arith.constant 0 : index
    %35 = vector.load %arg6[%c1_24, %c0_25, %c0_26] : memref<2x16x128xf32, #tpu.memory_space<vmem>>, vector<1x16x128xf32>
    %36 = vector.shape_cast %35 : vector<1x16x128xf32> to vector<16x128xf32>
    %37 = vector.shape_cast %34 : vector<16x128xf32> to vector<1x16x128xf32>
    tpu.vector_store %arg6[%c1_24, %c0_25, %c0_26], %37 {strides = array<i32>} : memref<2x16x128xf32, #tpu.memory_space<vmem>>, vector<1x16x128xf32>,
    return
  }
  func.func @transform_0(%arg0: i32, %arg1: i32) -> (i32, i32, i32) {
    %c0_i32 = arith.constant 0 : i32
    %c0_i32_0 = arith.constant 0 : i32
    %c0_i32_1 = arith.constant 0 : i32
    return %arg0, %c0_i32, %c0_i32_0 : i32, i32, i32
  }
  func.func @transform_1(%arg0: i32, %arg1: i32) -> (i32, i32, i32) {
    %c0_i32 = arith.constant 0 : i32
    %c0_i32_0 = arith.constant 0 : i32
    return %arg0, %arg1, %c0_i32 : i32, i32, i32
  }
  func.func @transform_2(%arg0: i32, %arg1: i32) -> (i32, i32) {
    %c0_i32 = arith.constant 0 : i32
    %c0_i32_0 = arith.constant 0 : i32
    %c0_i32_1 = arith.constant 0 : i32
    return %c0_i32, %c0_i32_0 : i32, i32
  }
  func.func @transform_3(%arg0: i32, %arg1: i32) -> (i32, i32) {
    %c0_i32 = arith.constant 0 : i32
    %c0_i32_0 = arith.constant 0 : i32
    %c0_i32_1 = arith.constant 0 : i32
    return %c0_i32, %c0_i32_0 : i32, i32
  }
  func.func @transform_4(%arg0: i32, %arg1: i32) -> (i32, i32, i32) {
    %c0_i32 = arith.constant 0 : i32
    %c0_i32_0 = arith.constant 0 : i32
    return %arg0, %arg1, %c0_i32 : i32, i32, i32
  }
}

</mosaic_0001>

<llo_original>
// kernel: tpu_custom_call.1
$region0: #{tpu_custom_call.1}
  #allocation0 [shape = 'u32[]', space=smem, size = 0x4, offset = 0x4, fixed_abs, tag = 'smem constant byte address 0x4 - core index']
  #allocation1 [shape = 'u32[144,128]{1,0:T(1,128)}', space=vmem, size = 0x12000, scoped, tag = 'internal scratch']
  %s0 = inlined_call_operand.hbm [shape: f32[2,16,32], index: 0, kind: input, shape index: {}]
  %s1 = inlined_call_operand.hbm [shape: f32[2,16,16], index: 1, kind: input, shape index: {}]
  %s2 = inlined_call_operand.hbm [shape: f32[32,128], index: 2, kind: input, shape index: {}]
  %s3 = inlined_call_operand.vmem [shape: f32[1,128], index: 3, kind: input, shape index: {}]
  %s4 = inlined_call_operand.hbm [shape: f32[2,16,128], index: 4, kind: output, shape index: {}]
  %s5 = sld [smem:[#allocation0]]
  $region38: #{tpu_custom_call.1} parent=0
    _
  %s7 = ssub.s32 1, %s5
  %s8 = scalar_select 0, %s7, %s5
  $region1: #{tpu_custom_call.1} parent=0
    #allocation2 [shape = 'u8[16384]{0}', space=vmem, size = 0x4000, scoped, tag = 'input window, operand 0, single buffered']
    #allocation3 [shape = 's32[1]{0}', space=sflag, size = 0x4, scoped, tag = 'scoped memory for tpu_custom_call.1']
    #allocation4 [shape = 's32[1]{0}', space=sflag, size = 0x4, scoped, tag = 'scoped memory for tpu_custom_call.1']
    #allocation5 [shape = 'u8[16384]{0}', space=vmem, size = 0x4000, scoped, tag = 'input window, operand 1, single buffered']
    #allocation6 [shape = 's32[1]{0}', space=sflag, size = 0x4, scoped, tag = 'scoped memory for tpu_custom_call.1']
    #allocation7 [shape = 'u8[16384]{0}', space=vmem, size = 0x4000, scoped, tag = 'input window, operand 2, single buffered']
    #allocation8 [shape = 'u8[16384]{0}', space=vmem, size = 0x4000, scoped, tag = 'output window, operand 0, single buffered']
    %9 = vsyncpa [#allocation3], 0
    %10 = vsyncpa [#allocation6], 0
    %11 = vsyncpa [#allocation4], 0
    // Predicated region
    $region2: #{tpu_custom_call.1} parent=1 // pred_check
      _
    $region3: #{tpu_custom_call.1} parent=1 // pred_check_branch
      %13 = sbr.rel (0) target = $region5
    $region4: #{tpu_custom_call.1} parent=1 // pred_region
      %s15 = ssub.s32 512, 512
      %16 = vsyncadd [#allocation3], %s15
      %s17 = sshll.u32 [#allocation2], 4
      %s18 = int_to_ptr.vmem [resolvable:$true] %s17
      %23 = dma.hbm_to_vmem [thread:$0]  %s0, 512, %s18, [#allocation3], 128, 128, 8
    $region5: #{tpu_custom_call.1} parent=1 // pred_fallthru
      _
    // Predicated region
    $region6: #{tpu_custom_call.1} parent=1 // pred_check
      _
    $region7: #{tpu_custom_call.1} parent=1 // pred_check_branch
      %25 = sbr.rel (0) target = $region9
    $region8: #{tpu_custom_call.1} parent=1 // pred_region
      %s27 = ssub.s32 512, 512
      %28 = vsyncadd [#allocation6], %s27
      %s29 = sshll.u32 [#allocation5], 4
      %s30 = int_to_ptr.vmem [resolvable:$true] %s29
      %35 = dma.hbm_to_vmem [thread:$0]  %s1, 512, %s30, [#allocation6], 128, 128, 8
    $region9: #{tpu_custom_call.1} parent=1 // pred_fallthru
      _
    // Predicated region
    $region10: #{tpu_custom_call.1} parent=1 // pred_check
      _
    $region11: #{tpu_custom_call.1} parent=1 // pred_check_branch
      %37 = sbr.rel (0) target = $region13
    $region12: #{tpu_custom_call.1} parent=1 // pred_region
      %s39 = ssub.s32 512, 512
      %40 = vsyncadd [#allocation6], %s39
      %s41 = sshll.u32 [#allocation7], 4
      %s42 = int_to_ptr.vmem [resolvable:$true] %s41
      %47 = dma.hbm_to_vmem [thread:$0]  %s2, 512, %s42, [#allocation6], 128, 128, 8
    $region13: #{tpu_custom_call.1} parent=1 // pred_fallthru
      _
    // Predicated region
    $region14: #{tpu_custom_call.1} parent=1 // pred_check
      _
    $region15: #{tpu_custom_call.1} parent=1 // pred_check_branch
      %49 = sbr.rel (0) target = $region17
    $region16: #{tpu_custom_call.1} parent=1 // pred_region
      _
    $region17: #{tpu_custom_call.1} parent=1 // pred_fallthru
      _
    // Predicated region
    $region18: #{tpu_custom_call.1} parent=1 // pred_check
      _
    $region19: #{tpu_custom_call.1} parent=1 // pred_check_branch
      %51 = sbr.rel (0) target = $region21
    $region20: #{tpu_custom_call.1} parent=1 // pred_region
      %52 = dma.done [#allocation3], 512
    $region21: #{tpu_custom_call.1} parent=1 // pred_fallthru
      _
    // Predicated region
    $region22: #{tpu_custom_call.1} parent=1 // pred_check
      _
    $region23: #{tpu_custom_call.1} parent=1 // pred_check_branch
      %54 = sbr.rel (0) target = $region25
    $region24: #{tpu_custom_call.1} parent=1 // pred_region
      %55 = dma.done [#allocation6], 512
    $region25: #{tpu_custom_call.1} parent=1 // pred_fallthru
      _
    // Predicated region
    $region26: #{tpu_custom_call.1} parent=1 // pred_check
      _
    $region27: #{tpu_custom_call.1} parent=1 // pred_check_branch
      %57 = sbr.rel (0) target = $region29
    $region28: #{tpu_custom_call.1} parent=1 // pred_region
      %58 = dma.done [#allocation6], 512
    $region29: #{tpu_custom_call.1} parent=1 // pred_fallthru
      _
    %v59 = vld [vmem:[#allocation7] sm:$0xff]
    %v60 = vld [vmem:[#allocation7 + $0x8] sm:$0xff]
    %v61 = vld [vmem:[#allocation7 + $0x10] sm:$0xff]
    %v62 = vld [vmem:[#allocation7 + $0x18] sm:$0xff]
    %v63 = vld [vmem:[%s3] sm:$0x1]
    %v64 = vld [vmem:[#allocation5] sm:$0xff]
    %v65 = vld [vmem:[#allocation5 + $0x8] sm:$0xff]
    %vm66 = vcmask 130048
    %v67 = vsel %vm66, %v64, 0.0
    %68 = vadd.xlane.f32.xlu0 %v67
    %v69 = vpop.xlane.xlu0 %68
    %v70 = vsel %vm66, %v65, 0.0
    %71 = vadd.xlane.f32.xlu0 %v70
    %v72 = vpop.xlane.xlu0 %71
    %v73 = vadd.f32 %v69, 1.0
    %v74 = vadd.f32 %v72, 1.0
    %v75 = vrcp.pop %v73
    %v76 = vrcp.pop %v74
    %v77 = vld [vmem:[#allocation2] sm:$0xff]
    %v78 = vld [vmem:[#allocation2 + $0x8] sm:$0xff]
    %v80 = vsel %vm66, %v64, 0
    %v83 = vsel %vm66, %v65, 0
    %85 = vmatprep.subr.mxu0 0.0
    %86 = vmatpush1.msra.mxu0 %v77
    %87 = vmatprep.subr.mxu0 0.0
    %88 = vmatpush1.msra.mxu0 %v78
    %89 = vmatprep.subr.mxu0 0.0
    %90 = vmatpush1.msra.mxu0 0.0
    %91 = vmatprep.subr.mxu0 0.0
    %92 = vmatpush1.msra.mxu0 0.0
    %93 = vmatprep.subr.mxu0 0.0
    %94 = vmatpush1.msra.mxu0 0.0
    %95 = vmatprep.subr.mxu0 0.0
    %96 = vmatpush1.msra.mxu0 0.0
    %97 = vmatprep.subr.mxu0 0.0
    %98 = vmatpush1.msra.mxu0 0.0
    %99 = vmatprep.subr.mxu0 0.0
    %100 = vmatpush1.msra.mxu0 0.0
    %101 = vmatprep.subr.mxu0 0.0
    %102 = vmatpush1.msra.mxu0 0.0
    %103 = vmatprep.subr.mxu0 0.0
    %104 = vmatpush1.msra.mxu0 0.0
    %105 = vmatprep.subr.mxu0 0.0
    %106 = vmatpush1.msra.mxu0 0.0
    %107 = vmatprep.subr.mxu0 0.0
    %108 = vmatpush1.msra.mxu0 0.0
    %109 = vmatprep.subr.mxu0 0.0
    %110 = vmatpush1.msra.mxu0 0.0
    %111 = vmatprep.subr.mxu0 0.0
    %112 = vmatpush1.msra.mxu0 0.0
    %113 = vmatprep.subr.mxu0 0.0
    %114 = vmatpush1.msra.mxu0 0.0
    %115 = vmatprep.subr.mxu0 0.0
    %116 = vmatpush1.msra.mxu0 0.0
    %117 = vmatprep.subr.mxu0 0.0
    %118 = vmatpush1.msra.mxu0 0.0
    %119 = vmatprep.subr.mxu0 0.0
    %120 = vmatpush1.msra.mxu0 0.0
    %121 = vmatprep.subr.mxu0 0.0
    %122 = vmatpush1.msra.mxu0 0.0
    %123 = vmatprep.subr.mxu0 0.0
    %124 = vmatpush1.msra.mxu0 0.0
    %125 = vmatprep.subr.mxu0 0.0
    %126 = vmatpush1.msra.mxu0 0.0
    %127 = vmatprep.subr.mxu0 0.0
    %128 = vmatpush1.msra.mxu0 0.0
    %129 = vmatprep.subr.mxu0 0.0
    %130 = vmatpush1.msra.mxu0 0.0
    %131 = vmatprep.subr.mxu0 0.0
    %132 = vmatpush1.msra.mxu0 0.0
    %133 = vmatprep.subr.mxu0 0.0
    %134 = vmatpush1.msra.mxu0 0.0
    %135 = vmatprep.subr.mxu0 0.0
    %136 = vmatpush1.msra.mxu0 0.0
    %137 = vmatprep.subr.mxu0 0.0
    %138 = vmatpush1.msra.mxu0 0.0
    %139 = vmatprep.subr.mxu0 0.0
    %140 = vmatpush1.msra.mxu0 0.0
    %141 = vmatprep.subr.mxu0 0.0
    %142 = vmatpush1.msra.mxu0 0.0
    %143 = vmatprep.subr.mxu0 0.0
    %144 = vmatpush1.msra.mxu0 0.0
    %145 = vmatprep.subr.mxu0 0.0
    %146 = vmatpush1.msra.mxu0 0.0
    %147 = vmatprep.subr.mxu0 0.0
    %148 = vmatpush1.msra.mxu0 0.0
    %149 = vmatprep.mubr.f32.mxu0 0.0
    %150 = vmatmul.mubr.f32.gmra.mrb[0].mxu0 %v80
    %v151 = vpop.f32.mrb[0].mxu0
    %v152 = vadd.f32 0.0, %v151
    %v153 = vpop.f32.mrb[0].mxu0
    %154 = vmatprep.mubr.f32.mxu0 0.0
    %155 = vmatmul.mubr.f32.gmra.mrb[0].mxu0 %v83
    %v156 = vpop.f32.mrb[0].mxu0
    %v157 = vadd.f32 0.0, %v156
    %v158 = vpop.f32.mrb[0].mxu0
    %159 = vdwg.mxu0
    %vm160 = vcmask 261120
    %v162 = vsel %vm160, %v152, 0
    %v165 = vsel %vm160, %v157, 0
    %167 = vmatprep.subr.mxu0 0.0
    %168 = vmatpush1.msra.mxu0 %v59
    %169 = vmatprep.subr.mxu0 0.0
    %170 = vmatpush1.msra.mxu0 %v60
    %171 = vmatprep.subr.mxu0 0.0
    %172 = vmatpush1.msra.mxu0 %v61
    %173 = vmatprep.subr.mxu0 0.0
    %174 = vmatpush1.msra.mxu0 %v62
    %175 = vmatprep.subr.mxu0 0.0
    %176 = vmatpush1.msra.mxu0 0.0
    %177 = vmatprep.subr.mxu0 0.0
    %178 = vmatpush1.msra.mxu0 0.0
    %179 = vmatprep.subr.mxu0 0.0
    %180 = vmatpush1.msra.mxu0 0.0
    %181 = vmatprep.subr.mxu0 0.0
    %182 = vmatpush1.msra.mxu0 0.0
    %183 = vmatprep.subr.mxu0 0.0
    %184 = vmatpush1.msra.mxu0 0.0
    %185 = vmatprep.subr.mxu0 0.0
    %186 = vmatpush1.msra.mxu0 0.0
    %187 = vmatprep.subr.mxu0 0.0
    %188 = vmatpush1.msra.mxu0 0.0
    %189 = vmatprep.subr.mxu0 0.0
    %190 = vmatpush1.msra.mxu0 0.0
    %191 = vmatprep.subr.mxu0 0.0
    %192 = vmatpush1.msra.mxu0 0.0
    %193 = vmatprep.subr.mxu0 0.0
    %194 = vmatpush1.msra.mxu0 0.0
    %195 = vmatprep.subr.mxu0 0.0
    %196 = vmatpush1.msra.mxu0 0.0
    %197 = vmatprep.subr.mxu0 0.0
    %198 = vmatpush1.msra.mxu0 0.0
    %199 = vmatprep.subr.mxu0 0.0
    %200 = vmatpush1.msra.mxu0 0.0
    %201 = vmatprep.subr.mxu0 0.0
    %202 = vmatpush1.msra.mxu0 0.0
    %203 = vmatprep.subr.mxu0 0.0
    %204 = vmatpush1.msra.mxu0 0.0
    %205 = vmatprep.subr.mxu0 0.0
    %206 = vmatpush1.msra.mxu0 0.0
    %207 = vmatprep.subr.mxu0 0.0
    %208 = vmatpush1.msra.mxu0 0.0
    %209 = vmatprep.subr.mxu0 0.0
    %210 = vmatpush1.msra.mxu0 0.0
    %211 = vmatprep.subr.mxu0 0.0
    %212 = vmatpush1.msra.mxu0 0.0
    %213 = vmatprep.subr.mxu0 0.0
    %214 = vmatpush1.msra.mxu0 0.0
    %215 = vmatprep.subr.mxu0 0.0
    %216 = vmatpush1.msra.mxu0 0.0
    %217 = vmatprep.subr.mxu0 0.0
    %218 = vmatpush1.msra.mxu0 0.0
    %219 = vmatprep.subr.mxu0 0.0
    %220 = vmatpush1.msra.mxu0 0.0
    %221 = vmatprep.subr.mxu0 0.0
    %222 = vmatpush1.msra.mxu0 0.0
    %223 = vmatprep.subr.mxu0 0.0
    %224 = vmatpush1.msra.mxu0 0.0
    %225 = vmatprep.subr.mxu0 0.0
    %226 = vmatpush1.msra.mxu0 0.0
    %227 = vmatprep.subr.mxu0 0.0
    %228 = vmatpush1.msra.mxu0 0.0
    %229 = vmatprep.subr.mxu0 0.0
    %230 = vmatpush1.msra.mxu0 0.0
    %231 = vmatprep.mubr.f32.mxu0 0.0
    %232 = vmatmul.mubr.f32.gmra.mrb[0].mxu0 %v162
    %v233 = vpop.f32.mrb[0].mxu0
    %v234 = vadd.f32 0.0, %v233
    %v235 = vpop.f32.mrb[0].mxu0
    %236 = vmatprep.mubr.f32.mxu0 0.0
    %237 = vmatmul.mubr.f32.gmra.mrb[0].mxu0 %v165
    %v238 = vpop.f32.mrb[0].mxu0
    %v239 = vadd.f32 0.0, %v238
    %v240 = vpop.f32.mrb[0].mxu0
    %241 = vdwg.mxu0
    %v242 = vmul.f32 %v234, %v75
    %v243 = vmul.f32 %v239, %v76
    %v245 = vlaneseq
    %v246 = vshrl.u32 %v245, 7
    %v247 = vsub.s32 0, %v246
    %v248 = vrot.slane %v63, %v247
    %v250 = vadd.f32 %v242, %v248
    %v251 = vadd.f32 %v243, %v248
    %252 = vst [vmem:[#allocation8] sm:$0xff] %v250
    %253 = vst [vmem:[#allocation8 + $0x8] sm:$0xff] %v251
    %s254 = scalar_lea.vmem [#allocation5], 16
    %v255 = vld [vmem:[%s254] sm:$0xff]
    %v256 = vld [vmem:[%s254 + $0x8] sm:$0xff]
    %v257 = vsel %vm66, %v255, 0.0
    %258 = vadd.xlane.f32.xlu0 %v257
    %v259 = vpop.xlane.xlu0 %258
    %v260 = vsel %vm66, %v256, 0.0
    %261 = vadd.xlane.f32.xlu0 %v260
    %v262 = vpop.xlane.xlu0 %261
    %v263 = vadd.f32 %v259, 1.0
    %v264 = vadd.f32 %v262, 1.0
    %v265 = vrcp.pop %v263
    %v266 = vrcp.pop %v264
    %s267 = scalar_lea.vmem [#allocation2], 16
    %v268 = vld [vmem:[%s267] sm:$0xff]
    %v269 = vld [vmem:[%s267 + $0x8] sm:$0xff]
    %v271 = vsel %vm66, %v255, 0
    %v274 = vsel %vm66, %v256, 0
    %276 = vmatprep.subr.mxu0 0.0
    %277 = vmatpush1.msra.mxu0 %v268
    %278 = vmatprep.subr.mxu0 0.0
    %279 = vmatpush1.msra.mxu0 %v269
    %280 = vmatprep.subr.mxu0 0.0
    %281 = vmatpush1.msra.mxu0 0.0
    %282 = vmatprep.subr.mxu0 0.0
    %283 = vmatpush1.msra.mxu0 0.0
    %284 = vmatprep.subr.mxu0 0.0
    %285 = vmatpush1.msra.mxu0 0.0
    %286 = vmatprep.subr.mxu0 0.0
    %287 = vmatpush1.msra.mxu0 0.0
    %288 = vmatprep.subr.mxu0 0.0
    %289 = vmatpush1.msra.mxu0 0.0
    %290 = vmatprep.subr.mxu0 0.0
    %291 = vmatpush1.msra.mxu0 0.0
    %292 = vmatprep.subr.mxu0 0.0
    %293 = vmatpush1.msra.mxu0 0.0
    %294 = vmatprep.subr.mxu0 0.0
    %295 = vmatpush1.msra.mxu0 0.0
    %296 = vmatprep.subr.mxu0 0.0
    %297 = vmatpush1.msra.mxu0 0.0
    %298 = vmatprep.subr.mxu0 0.0
    %299 = vmatpush1.msra.mxu0 0.0
    %300 = vmatprep.subr.mxu0 0.0
    %301 = vmatpush1.msra.mxu0 0.0
    %302 = vmatprep.subr.mxu0 0.0
    %303 = vmatpush1.msra.mxu0 0.0
    %304 = vmatprep.subr.mxu0 0.0
    %305 = vmatpush1.msra.mxu0 0.0
    %306 = vmatprep.subr.mxu0 0.0
    %307 = vmatpush1.msra.mxu0 0.0
    %308 = vmatprep.subr.mxu0 0.0
    %309 = vmatpush1.msra.mxu0 0.0
    %310 = vmatprep.subr.mxu0 0.0
    %311 = vmatpush1.msra.mxu0 0.0
    %312 = vmatprep.subr.mxu0 0.0
    %313 = vmatpush1.msra.mxu0 0.0
    %314 = vmatprep.subr.mxu0 0.0
    %315 = vmatpush1.msra.mxu0 0.0
    %316 = vmatprep.subr.mxu0 0.0
    %317 = vmatpush1.msra.mxu0 0.0
    %318 = vmatprep.subr.mxu0 0.0
    %319 = vmatpush1.msra.mxu0 0.0
    %320 = vmatprep.subr.mxu0 0.0
    %321 = vmatpush1.msra.mxu0 0.0
    %322 = vmatprep.subr.mxu0 0.0
    %323 = vmatpush1.msra.mxu0 0.0
    %324 = vmatprep.subr.mxu0 0.0
    %325 = vmatpush1.msra.mxu0 0.0
    %326 = vmatprep.subr.mxu0 0.0
    %327 = vmatpush1.msra.mxu0 0.0
    %328 = vmatprep.subr.mxu0 0.0
    %329 = vmatpush1.msra.mxu0 0.0
    %330 = vmatprep.subr.mxu0 0.0
    %331 = vmatpush1.msra.mxu0 0.0
    %332 = vmatprep.subr.mxu0 0.0
    %333 = vmatpush1.msra.mxu0 0.0
    %334 = vmatprep.subr.mxu0 0.0
    %335 = vmatpush1.msra.mxu0 0.0
    %336 = vmatprep.subr.mxu0 0.0
    %337 = vmatpush1.msra.mxu0 0.0
    %338 = vmatprep.subr.mxu0 0.0
    %339 = vmatpush1.msra.mxu0 0.0
    %340 = vmatprep.mubr.f32.mxu0 0.0
    %341 = vmatmul.mubr.f32.gmra.mrb[0].mxu0 %v271
    %v342 = vpop.f32.mrb[0].mxu0
    %v343 = vadd.f32 0.0, %v342
    %v344 = vpop.f32.mrb[0].mxu0
    %345 = vmatprep.mubr.f32.mxu0 0.0
    %346 = vmatmul.mubr.f32.gmra.mrb[0].mxu0 %v274
    %v347 = vpop.f32.mrb[0].mxu0
    %v348 = vadd.f32 0.0, %v347
    %v349 = vpop.f32.mrb[0].mxu0
    %350 = vdwg.mxu0
    %v352 = vsel %vm160, %v343, 0
    %v355 = vsel %vm160, %v348, 0
    %357 = vmatprep.subr.mxu0 0.0
    %358 = vmatpush1.msra.mxu0 %v59
    %359 = vmatprep.subr.mxu0 0.0
    %360 = vmatpush1.msra.mxu0 %v60
    %361 = vmatprep.subr.mxu0 0.0
    %362 = vmatpush1.msra.mxu0 %v61
    %363 = vmatprep.subr.mxu0 0.0
    %364 = vmatpush1.msra.mxu0 %v62
    %365 = vmatprep.subr.mxu0 0.0
    %366 = vmatpush1.msra.mxu0 0.0
    %367 = vmatprep.subr.mxu0 0.0
    %368 = vmatpush1.msra.mxu0 0.0
    %369 = vmatprep.subr.mxu0 0.0
    %370 = vmatpush1.msra.mxu0 0.0
    %371 = vmatprep.subr.mxu0 0.0
    %372 = vmatpush1.msra.mxu0 0.0
    %373 = vmatprep.subr.mxu0 0.0
    %374 = vmatpush1.msra.mxu0 0.0
    %375 = vmatprep.subr.mxu0 0.0
    %376 = vmatpush1.msra.mxu0 0.0
    %377 = vmatprep.subr.mxu0 0.0
    %378 = vmatpush1.msra.mxu0 0.0
    %379 = vmatprep.subr.mxu0 0.0
    %380 = vmatpush1.msra.mxu0 0.0
    %381 = vmatprep.subr.mxu0 0.0
    %382 = vmatpush1.msra.mxu0 0.0
    %383 = vmatprep.subr.mxu0 0.0
    %384 = vmatpush1.msra.mxu0 0.0
    %385 = vmatprep.subr.mxu0 0.0
    %386 = vmatpush1.msra.mxu0 0.0
    %387 = vmatprep.subr.mxu0 0.0
    %388 = vmatpush1.msra.mxu0 0.0
    %389 = vmatprep.subr.mxu0 0.0
    %390 = vmatpush1.msra.mxu0 0.0
    %391 = vmatprep.subr.mxu0 0.0
    %392 = vmatpush1.msra.mxu0 0.0
    %393 = vmatprep.subr.mxu0 0.0
    %394 = vmatpush1.msra.mxu0 0.0
    %395 = vmatprep.subr.mxu0 0.0
    %396 = vmatpush1.msra.mxu0 0.0
    %397 = vmatprep.subr.mxu0 0.0
    %398 = vmatpush1.msra.mxu0 0.0
    %399 = vmatprep.subr.mxu0 0.0
    %400 = vmatpush1.msra.mxu0 0.0
    %401 = vmatprep.subr.mxu0 0.0
    %402 = vmatpush1.msra.mxu0 0.0
    %403 = vmatprep.subr.mxu0 0.0
    %404 = vmatpush1.msra.mxu0 0.0
    %405 = vmatprep.subr.mxu0 0.0
    %406 = vmatpush1.msra.mxu0 0.0
    %407 = vmatprep.subr.mxu0 0.0
    %408 = vmatpush1.msra.mxu0 0.0
    %409 = vmatprep.subr.mxu0 0.0
    %410 = vmatpush1.msra.mxu0 0.0
    %411 = vmatprep.subr.mxu0 0.0
    %412 = vmatpush1.msra.mxu0 0.0
    %413 = vmatprep.subr.mxu0 0.0
    %414 = vmatpush1.msra.mxu0 0.0
    %415 = vmatprep.subr.mxu0 0.0
    %416 = vmatpush1.msra.mxu0 0.0
    %417 = vmatprep.subr.mxu0 0.0
    %418 = vmatpush1.msra.mxu0 0.0
    %419 = vmatprep.subr.mxu0 0.0
    %420 = vmatpush1.msra.mxu0 0.0
    %421 = vmatprep.mubr.f32.mxu0 0.0
    %422 = vmatmul.mubr.f32.gmra.mrb[0].mxu0 %v352
    %v423 = vpop.f32.mrb[0].mxu0
    %v424 = vadd.f32 0.0, %v423
    %v425 = vpop.f32.mrb[0].mxu0
    %426 = vmatprep.mubr.f32.mxu0 0.0
    %427 = vmatmul.mubr.f32.gmra.mrb[0].mxu0 %v355
    %v428 = vpop.f32.mrb[0].mxu0
    %v429 = vadd.f32 0.0, %v428
    %v430 = vpop.f32.mrb[0].mxu0
    %431 = vdwg.mxu0
    %v432 = vmul.f32 %v424, %v265
    %v433 = vmul.f32 %v429, %v266
    %v434 = vadd.f32 %v432, %v248
    %v435 = vadd.f32 %v433, %v248
    %s436 = scalar_lea.vmem [#allocation8], 16
    %437 = vst [vmem:[%s436] sm:$0xff] %v434
    %438 = vst [vmem:[%s436 + $0x8] sm:$0xff] %v435
    // Predicated region
    $region30: #{tpu_custom_call.1} parent=1 // pred_check
      _
    $region31: #{tpu_custom_call.1} parent=1 // pred_check_branch
      %440 = sbr.rel (0) target = $region33
    $region32: #{tpu_custom_call.1} parent=1 // pred_region
      %s442 = ssub.s32 512, 512
      %443 = vsyncadd [#allocation4], %s442
      %s444 = sshll.u32 [#allocation8], 4
      %s445 = int_to_ptr.vmem [resolvable:$true] %s444
      %450 = dma.vmem_to_hbm [thread:$0]  %s445, 512, %s4, [#allocation4], 128, 128, 8
    $region33: #{tpu_custom_call.1} parent=1 // pred_fallthru
      _
    // Predicated region
    $region34: #{tpu_custom_call.1} parent=1 // pred_check
      _
    $region35: #{tpu_custom_call.1} parent=1 // pred_check_branch
      %452 = sbr.rel (0) target = $region37
    $region36: #{tpu_custom_call.1} parent=1 // pred_region
      %453 = dma.done [#allocation4], 512
    $region37: #{tpu_custom_call.1} parent=1 // pred_fallthru
      _
    %454 = vsyncpa [#allocation3], 1
    %455 = vsyncpa [#allocation6], 1
    %456 = vsyncpa [#allocation4], 1

</llo_original>
